<compile_context>
chip_gen: v5e
topology: v5e:2x2
jax: 0.10.0
libtpu: 0.0.40
codegen_flags: <defaults>
</compile_context>

<pallas_src>
import functools

import numpy as np
import jax
import jax.numpy as jnp
from jax.experimental import pallas as pl
from jax.experimental.pallas import tpu as pltpu


# ---------------------------------------------------------------------------
# helpers
# ---------------------------------------------------------------------------

def _round_up(x, m):
    return ((x + m - 1) // m) * m


def _pick_m_tile(m):
    """Pick an M tile that divides m so no M padding / output slicing is needed."""
    if m <= 512:
        return m, m                       # single full block (ok even if m % 8 != 0)
    for tm in range(512, 7, -8):          # largest multiple of 8 <= 512 dividing m
        if m % tm == 0:
            return tm, m
    mp = _round_up(m, 256)                # rare fallback: pad M
    return 256, mp


def _default_vmem_limit():
    # Generation-aware VMEM budget: ~75% of capacity, capped at 100 MiB
    # (v5e/v6e: 128 MiB -> 96 MiB, v7x: 64 MiB -> 48 MiB). Worst-case tiles here
    # stay < ~20 MiB so all generations fit with headroom.
    try:
        cap = pltpu.get_tpu_info().vmem_capacity_bytes
        return int(max(32 * 1024 * 1024, min(0.75 * cap, 100 * 1024 * 1024)))
    except Exception:
        return 48 * 1024 * 1024


_VMEM_LIMIT = _default_vmem_limit()


# ---------------------------------------------------------------------------
# Pallas kernels
# ---------------------------------------------------------------------------

def _mm_bias_act_kernel(a_ref, w_ref, b_ref, o_ref, *, relu):
    # Single-K-step bf16 matmul on the MXU, f32 epilogue (folded BN bias + ReLU).
    y = jnp.dot(a_ref[...], w_ref[...], preferred_element_type=jnp.float32)
    y = y + b_ref[...]
    if relu:
        y = jnp.maximum(y, 0.0)
    o_ref[...] = y.astype(o_ref.dtype)


def _mm_bias_res_act_kernel(a_ref, w_ref, b_ref, r_ref, o_ref, *, relu):
    # Same plus a fused residual add (in f32) before the activation.
    y = jnp.dot(a_ref[...], w_ref[...], preferred_element_type=jnp.float32)
    y = y + b_ref[...] + r_ref[...].astype(jnp.float32)
    if relu:
        y = jnp.maximum(y, 0.0)
    o_ref[...] = y.astype(o_ref.dtype)


def _conv3x3_s1_kernel(x_ref, w_ref, b_ref, o_ref, acc_ref, *, m_out, wp, cin_p, relu):
    # Fused stride-1 3x3 conv for one image.
    #   x_ref: (1, (H+3)*(W+2), cin_p) bf16  -- flat view of the spatially padded image
    #   w_ref: (9*cin_p, cout_p) bf16        -- per-tap weight rows, BN scale folded
    #   b_ref: (1, cout_p) f32               -- folded BN bias
    #   o_ref: (1, m_out=H*(W+2), cout_p) bf16
    # Tap (di, dj) is a constant row offset di*(W+2)+dj into the flat view, so each
    # tap contribution is a plain 2D matmul accumulated into the f32 VMEM scratch.
    acc_ref[...] = jnp.zeros_like(acc_ref)
    for di in range(3):
        for dj in range(3):
            off = di * wp + dj
            tap = di * 3 + dj
            a = x_ref[0, off:off + m_out, :]
            w = w_ref[tap * cin_p:(tap + 1) * cin_p, :]
            acc_ref[...] += jnp.dot(a, w, preferred_element_type=jnp.float32)
    y = acc_ref[...] + b_ref[...]
    if relu:
        y = jnp.maximum(y, 0.0)
    o_ref[0] = y.astype(o_ref.dtype)


def _avgpool_kernel(x_ref, o_ref):
    # x: (B, P, TN) bf16 -> f32 accumulate, mean over the P spatial positions.
    o_ref[...] = jnp.mean(x_ref[...].astype(jnp.float32), axis=1)


# ---------------------------------------------------------------------------
# Pallas call wrappers
# ---------------------------------------------------------------------------

def matmul_bias_act(a, w_p, bias_p, res=None, relu=True):
    """Fused  act((a @ w) + bias [+ res])  with a single K step.

    `w_p` (kp, np_) bf16 (BN scale already folded in), `bias_p` (1, np_) f32.
    K is never grid-tiled (max kp in ResNet-152 is 4608 -> slab fits VMEM), so
    weights stay resident across the inner M axis.  Returns (m, np_) bf16.
    """
    m, k = a.shape
    kp, np_ = w_p.shape

    tm, mp = _pick_m_tile(m)
    tn = np_ if np_ <= 1024 else 1024      # num_n is 1 for all layers except Cout=2048

    a_p = a.astype(jnp.bfloat16)
    if kp != k or mp != m:                 # K pad only for the 7x7 stem (147 -> 256)
        a_p = jnp.pad(a_p, ((0, mp - m), (0, kp - k)))

    in_specs = [
        pl.BlockSpec((tm, kp), lambda j, i: (i, 0)),   # activations, whole-K slab
        pl.BlockSpec((kp, tn), lambda j, i: (0, j)),   # weights, resident across inner M
        pl.BlockSpec((1, tn), lambda j, i: (0, j)),
    ]
    args = [a_p, w_p, bias_p]

    if res is not None:
        r_p = res.astype(jnp.bfloat16)
        if mp != m:
            r_p = jnp.pad(r_p, ((0, mp - m), (0, 0)))
        in_specs.append(pl.BlockSpec((tm, tn), lambda j, i: (i, j)))
        args.append(r_p)
        kernel = functools.partial(_mm_bias_res_act_kernel, relu=relu)
    else:
        kernel = functools.partial(_mm_bias_act_kernel, relu=relu)

    out = pl.pallas_call(
        kernel,
        out_shape=jax.ShapeDtypeStruct((mp, np_), jnp.bfloat16),
        grid=(np_ // tn, mp // tm),        # N outer, M inner
        in_specs=in_specs,
        out_specs=pl.BlockSpec((tm, tn), lambda j, i: (i, j)),
        compiler_params=pltpu.CompilerParams(
            dimension_semantics=("parallel", "parallel"),
            vmem_limit_bytes=_VMEM_LIMIT,
        ),
    )(*args)
    return out if mp == m else out[:m]


def conv3x3_s1_bn_act(x, layer, relu=True):
    """Fused stride-1 3x3 conv + folded BN + ReLU (no im2col patches in HBM)."""
    w, b = layer
    bsz, h, wdt, c = x.shape
    assert w.shape[0] == 9 * c
    wp = wdt + 2
    cout_p = w.shape[1]
    m_out = h * wp                         # includes 2 junk columns per row (sliced below)
    n_in = (h + 3) * wp                    # pad: 1 top, 2 bottom, 1 left, 1 right

    xp = jnp.pad(x.astype(jnp.bfloat16), ((0, 0), (1, 2), (1, 1), (0, 0)))
    xf = xp.reshape(bsz, n_in, c)

    out = pl.pallas_call(
        functools.partial(_conv3x3_s1_kernel, m_out=m_out, wp=wp, cin_p=c, relu=relu),
        out_shape=jax.ShapeDtypeStruct((bsz, m_out, cout_p), jnp.bfloat16),
        grid=(bsz,),
        in_specs=[
            pl.BlockSpec((1, n_in, c), lambda i: (i, 0, 0)),
            pl.BlockSpec((9 * c, cout_p), lambda i: (0, 0)),
            pl.BlockSpec((1, cout_p), lambda i: (0, 0)),
        ],
        out_specs=pl.BlockSpec((1, m_out, cout_p), lambda i: (i, 0, 0)),
        scratch_shapes=[pltpu.VMEM((m_out, cout_p), jnp.float32)],
        compiler_params=pltpu.CompilerParams(
            dimension_semantics=("parallel",),
            vmem_limit_bytes=_VMEM_LIMIT,
        ),
    )(xf, w, b)
    return out.reshape(bsz, h, wp, cout_p)[:, :, :wdt, :]


def global_avg_pool(x):
    """x: (B, P, C) bf16 -> (B, C) f32 mean over P (adaptive avg pool to 1x1)."""
    b, p, c = x.shape
    tn = 256 if c % 256 == 0 else 128
    return pl.pallas_call(
        _avgpool_kernel,
        out_shape=jax.ShapeDtypeStruct((b, c), jnp.float32),
        grid=(c // tn,),
        in_specs=[pl.BlockSpec((b, p, tn), lambda j: (0, 0, j))],
        out_specs=pl.BlockSpec((b, tn), lambda j: (0, j)),
        compiler_params=pltpu.CompilerParams(
            dimension_semantics=("parallel",),
            vmem_limit_bytes=_VMEM_LIMIT,
        ),
    )(x)


# ---------------------------------------------------------------------------
# Plain-JAX glue: im2col (stem + the 3 stride-2 3x3 convs only) and max-pool
# ---------------------------------------------------------------------------

def _im2col(x, kh, kw, stride, pad):
    # TODO(synk): only the 7x7 stem and the three stride-2 3x3 convs still build
    #             im2col patches; all stride-1 3x3 convs use the fused kernel.
    b, h, w, c = x.shape
    x = x.astype(jnp.bfloat16)
    xp = jnp.pad(x, ((0, 0), (pad, pad), (pad, pad), (0, 0)))
    ho = (h + 2 * pad - kh) // stride + 1
    wo = (w + 2 * pad - kw) // stride + 1
    cols = []
    for i in range(kh):
        for j in range(kw):
            cols.append(xp[:, i:i + stride * ho:stride, j:j + stride * wo:stride, :])
    patches = jnp.concatenate(cols, axis=-1).reshape(b * ho * wo, kh * kw * c)
    return patches, (ho, wo)


def _maxpool_3x3_s2(x):
    # 3x3 stride-2 max pool, padding=1.  Zero padding == -inf padding because the
    # input is post-ReLU (non-negative) -- keep that invariant.
    b, h, w, c = x.shape
    xp = jnp.pad(x, ((0, 0), (1, 1), (1, 1), (0, 0)))
    ho = (h - 1) // 2 + 1
    wo = (w - 1) // 2 + 1
    out = None
    for i in range(3):
        for j in range(3):
            v = xp[:, i:i + 2 * ho:2, j:j + 2 * wo:2, :]
            out = v if out is None else jnp.maximum(out, v)
    return out


def conv1x1_bn_act(x, layer, stride=1, relu=True, residual=None):
    """1x1 conv (pure reshape, no patch copy) + folded BN + optional residual + ReLU."""
    w, b = layer
    bsz = x.shape[0]
    if stride != 1:
        x = x[:, ::stride, ::stride, :]
    ho, wo, c = x.shape[1], x.shape[2], x.shape[3]
    a = x.reshape(bsz * ho * wo, c)
    res_m = None
    if residual is not None:
        res_m = residual.reshape(bsz * ho * wo, residual.shape[-1])
    y = matmul_bias_act(a, w, b, res=res_m, relu=relu)
    return y.reshape(bsz, ho, wo, w.shape[1])


def conv_im2col_bn_act(x, layer, kh, kw, stride, pad, relu=True):
    w, b = layer
    patches, (ho, wo) = _im2col(x, kh, kw, stride, pad)
    y = matmul_bias_act(patches, w, b, res=None, relu=relu)
    return y.reshape(x.shape[0], ho, wo, w.shape[1])


# ---------------------------------------------------------------------------
# ResNet-152 backbone (torchvision children()[:-1]  ==  everything but the fc)
# ---------------------------------------------------------------------------

_LAYERS = (3, 8, 36, 3)        # resnet152 bottleneck block counts
_WIDTHS = (64, 128, 256, 512)
_EXPANSION = 4


def make_resnet152_params(key):
    idx = [0]

    def conv_p(cin, cout, kh, kw, bn_scale, pad_cin=True):
        k = jax.random.fold_in(key, idx[0])
        idx[0] += 1
        cin_p = _round_up(cin, 128) if pad_cin else cin
        cout_p = _round_up(cout, 128)
        # Weight in matmul layout (kh*kw*cin_p, cout_p); the folded inference-BN
        # scale is multiplied into the columns in f32 before the bf16 cast.
        # Padded input-channel rows / output-channel columns are zero so the
        # "channels padded to 128 lanes" invariant holds end-to-end.
        w = jax.random.normal(k, (kh * kw, cin, cout), jnp.float32) / np.sqrt(kh * kw * cin)
        w = w * bn_scale
        w = jnp.pad(w, ((0, 0), (0, cin_p - cin), (0, cout_p - cout)))
        w = w.reshape(kh * kw * cin_p, cout_p)
        kp = _round_up(w.shape[0], 128)
        if kp != w.shape[0]:               # only the 7x7 stem (K = 147 -> 256)
            w = jnp.pad(w, ((0, kp - w.shape[0]), (0, 0)))
        bias = jnp.zeros((1, cout_p), jnp.float32)   # folded BN bias
        return (w.astype(jnp.bfloat16), bias)

    params = {"stem": conv_p(3, 64, 7, 7, 1.0, pad_cin=False), "stages": []}
    in_ch = 64
    for n_blocks, width in zip(_LAYERS, _WIDTHS):
        stage = []
        out_ch = width * _EXPANSION
        for bi in range(n_blocks):
            blk = {
                "conv1": conv_p(in_ch, width, 1, 1, 1.0),
                "conv2": conv_p(width, width, 3, 3, 1.0),
                # small scale on the last BN of each block keeps the synthetic net stable
                "conv3": conv_p(width, out_ch, 1, 1, 0.2),
            }
            if bi == 0:
                blk["down"] = conv_p(in_ch, out_ch, 1, 1, 1.0)
            stage.append(blk)
            in_ch = out_ch
        params["stages"].append(stage)
    return params


@functools.partial(jax.jit, static_argnames=("stride",))
def _bottleneck_block(x, blk, stride=1):
    identity = x
    out = conv1x1_bn_act(x, blk["conv1"], stride=1, relu=True)
    if stride == 1:
        out = conv3x3_s1_bn_act(out, blk["conv2"], relu=True)       # fused, no im2col
    else:
        out = conv_im2col_bn_act(out, blk["conv2"], 3, 3, stride, 1, relu=True)
    if "down" in blk:
        identity = conv1x1_bn_act(x, blk["down"], stride=stride, relu=False)
    # conv3 + BN, then += identity, then ReLU -- all fused in one Pallas kernel
    out = conv1x1_bn_act(out, blk["conv3"], stride=1, relu=True, residual=identity)
    return out


@jax.jit
def _stem(stem_params, image_nchw):
    # NCHW (PyTorch convention) -> NHWC bf16 for the kernels.
    x = jnp.transpose(image_nchw, (0, 2, 3, 1)).astype(jnp.bfloat16)
    x = conv_im2col_bn_act(x, stem_params, 7, 7, 2, 3, relu=True)    # 7x7/2 conv+BN+ReLU
    return _maxpool_3x3_s2(x)                                        # 3x3/2 maxpool


@jax.jit
def _head(x):
    b, h, w, c = x.shape
    # bf16 feature map in, f32 accumulation inside the kernel, (B, 2048) f32 out.
    return global_avg_pool(x.reshape(b, h * w, c))


def resnet152_features(params, image_nchw):
    x = _stem(params["stem"], image_nchw)
    for li, n_blocks in enumerate(_LAYERS):
        for bi in range(n_blocks):
            stride = 2 if (li > 0 and bi == 0) else 1
            x = _bottleneck_block(x, params["stages"][li][bi], stride=stride)
    return _head(x)   # == avgpool.squeeze(-1).squeeze(-1), (B, 2048) float32


def feature_extractor_forward(params, image, image_filename,
                              random_embed=False, batch_size=64, rng=None):
    """Mirrors FeatureExtractor.forward: returns {filename: 2048-d feature}."""
    if random_embed:
        f = jax.random.normal(rng, (batch_size, 2048), jnp.float32)
    else:
        f = resnet152_features(params, image)
    f = np.asarray(jax.block_until_ready(f))
    return {image_filename[i]: f[i] for i in range(len(image_filename))}


# ---------------------------------------------------------------------------
if __name__ == "__main__":
    key = jax.random.PRNGKey(0)
    pkey, xkey = jax.random.split(key)

    params = make_resnet152_params(pkey)

    # small deterministic input, NCHW like the PyTorch module expects
    B, C, H, W = 2, 3, 64, 64
    image = jax.random.normal(xkey, (B, C, H, W), jnp.float32)
    image_filename = [f"img_{i:04d}.jpg" for i in range(B)]

    output_dict = feature_extractor_forward(params, image, image_filename)

    feats = np.stack([output_dict[name] for name in image_filename])
    assert feats.shape == (B, 2048), feats.shape
    assert feats.dtype == np.float32
    assert np.all(np.isfinite(feats))
    print("KERNEL_OK")
</pallas_src>

<mosaic_0001>
module attributes {stable_mosaic.version = 11 : i64} {
  func.func @_mm_bias_act_kernel(%arg0: i32, %arg1: i32, %arg2: memref<512x256xbf16, #tpu.memory_space<vmem>>, %arg3: memref<256x128xbf16, #tpu.memory_space<vmem>>, %arg4: memref<1x128xf32, #tpu.memory_space<vmem>>, %arg5: memref<512x128xbf16, #tpu.memory_space<vmem>>) attributes {dimension_semantics = [#tpu.dimension_semantics<parallel>, #tpu.dimension_semantics<parallel>], iteration_bounds = array<i64: 1, 4>, scalar_prefetch = 0 : i64, scratch_operands = 0 : i64, tpu.core_type = #tpu.core_type<tc>, window_params = [{transform_indices = @transform_0, window_bounds = array<i64: 512, 256>}, {transform_indices = @transform_1, window_bounds = array<i64: 256, 128>}, {transform_indices = @transform_2, window_bounds = array<i64: 1, 128>}, {transform_indices = @transform_3, window_bounds = array<i64: 512, 128>}]} {
    %c0 = arith.constant 0 : index
    %c0_0 = arith.constant 0 : index
    %0 = vector.load %arg2[%c0, %c0_0] : memref<512x256xbf16, #tpu.memory_space<vmem>>, vector<512x256xbf16>
    %c0_1 = arith.constant 0 : index
    %c0_2 = arith.constant 0 : index
    %1 = vector.load %arg3[%c0_1, %c0_2] : memref<256x128xbf16, #tpu.memory_space<vmem>>, vector<256x128xbf16>
    %cst = arith.constant dense<0.000000e+00> : vector<512x128xf32>
    %2 = tpu.matmul %0, %1, %cst {dimension_numbers = #tpu.dot_dimension_numbers<[1], [0], [0], [1], [0, 0, 1, 1], [], []>} : vector<512x256xbf16>, vector<256x128xbf16>, vector<512x128xf32> -> vector<512x128xf32>
    %c0_3 = arith.constant 0 : index
    %c0_4 = arith.constant 0 : index
    %3 = vector.load %arg4[%c0_3, %c0_4] : memref<1x128xf32, #tpu.memory_space<vmem>>, vector<1x128xf32>
    %4 = vector.broadcast %3 : vector<1x128xf32> to vector<512x128xf32>
    %5 = arith.addf %2, %4 : vector<512x128xf32>
    %cst_5 = arith.constant 0.000000e+00 : f32
    %6 = vector.broadcast %cst_5 : f32 to vector<512x128xf32>
    %7 = arith.maximumf %5, %6 : vector<512x128xf32>
    %8 = arith.truncf %7 : vector<512x128xf32> to vector<512x128xbf16>
    %c0_6 = arith.constant 0 : index
    %c0_7 = arith.constant 0 : index
    %9 = vector.load %arg5[%c0_6, %c0_7] : memref<512x128xbf16, #tpu.memory_space<vmem>>, vector<512x128xbf16>
    tpu.vector_store %arg5[%c0_6, %c0_7], %8 {strides = array<i32>} : memref<512x128xbf16, #tpu.memory_space<vmem>>, vector<512x128xbf16>,
    return
  }
  func.func @transform_0(%arg0: i32, %arg1: i32) -> (i32, i32) {
    %c0_i32 = arith.constant 0 : i32
    %c0_i32_0 = arith.constant 0 : i32
    return %arg1, %c0_i32 : i32, i32
  }
  func.func @transform_1(%arg0: i32, %arg1: i32) -> (i32, i32) {
    %c0_i32 = arith.constant 0 : i32
    %c0_i32_0 = arith.constant 0 : i32
    return %c0_i32, %arg0 : i32, i32
  }
  func.func @transform_2(%arg0: i32, %arg1: i32) -> (i32, i32) {
    %c0_i32 = arith.constant 0 : i32
    %c0_i32_0 = arith.constant 0 : i32
    return %c0_i32, %arg0 : i32, i32
  }
  func.func @transform_3(%arg0: i32, %arg1: i32) -> (i32, i32) {
    %c0_i32 = arith.constant 0 : i32
    return %arg1, %arg0 : i32, i32
  }
}

</mosaic_0001>

<llo_original>
// kernel: _stem.1
$region0: #{_stem.1}
  #allocation0 [shape = 'u32[]', space=smem, size = 0x4, offset = 0x4, fixed_abs, tag = 'smem constant byte address 0x4 - core index']
  #allocation1 [shape = 'u32[72,128]{1,0:T(1,128)}', space=vmem, size = 0x9000, scoped, tag = 'internal scratch']
  %s0 = inlined_call_operand.vmem [shape: bf16[2048,256], index: 0, kind: input, shape index: {}]
  %s1 = inlined_call_operand.vmem [shape: bf16[256,128], index: 1, kind: input, shape index: {}]
  %s2 = inlined_call_operand.vmem [shape: f32[1,128], index: 2, kind: input, shape index: {}]
  %s3 = inlined_call_operand.vmem [shape: bf16[2048,128], index: 3, kind: output, shape index: {}]
  %s4 = sld [smem:[#allocation0]]
  $region45: #{_stem.1} parent=0
    _
  %s6 = ssub.s32 1, %s4
  %s7 = scalar_select 0, %s6, %s4
  loop: start=0, step=1, limit=6
  $region2: #{_stem.1} parent=0 // loop_pre_header
    _
  $region3: #{_stem.1} parent=0 // loop_header
    %s9 = sphi 0, %s13
    %p10 = scmp.ge.s32.totalorder %s9, 6
    %s16 = sphi 0, %s28
    %s17 = sphi 0, %s24
    %s18 = sphi 0, %s16
    %s19 = sphi 0, %s17
    %s20 = sphi 0, %s18
    %s21 = sphi 0, %s19
    %s31 = sphi 0, %s33
    %s34 = sphi 0, %s31
    %s35 = sphi 0, %s34
    %s51 = sphi 0, %s35
    %s57 = sphi 0, %s59
    %s60 = sphi 0, %s57
    %s61 = sphi 0, %s60
    %s77 = sphi 0, %s61
    %s83 = sphi 0, %s85
    %s86 = sphi 0, %s83
    %s87 = sphi 0, %s86
    %s103 = sphi 0, %s87
    %s111 = sphi 0, %s113
    %s114 = sphi 0, %s111
    %s115 = sphi 0, %s114
    %s131 = sphi 0, %s115
  $region4: #{_stem.1} parent=0 // loop_header_branch
    %12 = sbr.rel (%p10) target = $region8
  $region5: #{_stem.1} parent=0 // loop_body
    %s14 = ssub.s32 %s9, 1
    %s15 = ssub.s32 %s9, 2
    %s22 = sadd.s32 1, %s17
    %p23 = scmp.ge.s32.totalorder %s22, 4
    %s24 = scalar_select %p23, 0, %s22
    %s25 = sadd.s32 1, %s16
    %s26 = scalar_select %p23, %s25, %s16
    %p27 = scmp.ge.s32.totalorder %s26, 1
    %s28 = scalar_select %p27, 0, %s26
    %s29 = ssub.s32 %s17, %s24
    %p30 = scmp.eq.s32.totalorder %s29, 0
    %s32 = sadd.s32 %s31, 1
    %s33 = scalar_select %p30, %s31, %s32
    %p36 = pneg %p30
    %p37 = scmp.eq.s32.totalorder %s9, 3
    %p38 = por %p36, %p37
    %p39 = scmp.ne.s32.totalorder %s31, %s34
    %p40 = scmp.eq.s32.totalorder %s9, 0
    %p41 = por %p39, %p40
    %p42 = scmp.ne.s32.totalorder %s31, %s34
    %p43 = scmp.eq.s32.totalorder %s14, 3
    %p44 = por %p42, %p43
    %p45 = scmp.ne.s32.totalorder %s34, %s35
    %p46 = scmp.eq.s32.totalorder %s14, 0
    %p47 = por %p45, %p46
    %p48 = scmp.ne.s32.totalorder %s34, %s35
    %p49 = scmp.eq.s32.totalorder %s15, 3
    %p50 = por %p48, %p49
    %p52 = scmp.ne.s32.totalorder %s35, %s51
    %p53 = scmp.eq.s32.totalorder %s15, 0
    %p54 = por %p52, %p53
    %s55 = ssub.s32 %s16, %s28
    %p56 = scmp.eq.s32.totalorder %s55, 0
    %s58 = sadd.s32 %s57, 1
    %s59 = scalar_select %p56, %s57, %s58
    %p62 = pneg %p56
    %p63 = scmp.eq.s32.totalorder %s9, 3
    %p64 = por %p62, %p63
    %p65 = scmp.ne.s32.totalorder %s57, %s60
    %p66 = scmp.eq.s32.totalorder %s9, 0
    %p67 = por %p65, %p66
    %p68 = scmp.ne.s32.totalorder %s57, %s60
    %p69 = scmp.eq.s32.totalorder %s14, 3
    %p70 = por %p68, %p69
    %p71 = scmp.ne.s32.totalorder %s60, %s61
    %p72 = scmp.eq.s32.totalorder %s14, 0
    %p73 = por %p71, %p72
    %p74 = scmp.ne.s32.totalorder %s60, %s61
    %p75 = scmp.eq.s32.totalorder %s15, 3
    %p76 = por %p74, %p75
    %p78 = scmp.ne.s32.totalorder %s61, %s77
    %p79 = scmp.eq.s32.totalorder %s15, 0
    %p80 = por %p78, %p79
    %s81 = ssub.s32 %s16, %s28
    %p82 = scmp.eq.s32.totalorder %s81, 0
    %s84 = sadd.s32 %s83, 1
    %s85 = scalar_select %p82, %s83, %s84
    %p88 = pneg %p82
    %p89 = scmp.eq.s32.totalorder %s9, 3
    %p90 = por %p88, %p89
    %p91 = scmp.ne.s32.totalorder %s83, %s86
    %p92 = scmp.eq.s32.totalorder %s9, 0
    %p93 = por %p91, %p92
    %p94 = scmp.ne.s32.totalorder %s83, %s86
    %p95 = scmp.eq.s32.totalorder %s14, 3
    %p96 = por %p94, %p95
    %p97 = scmp.ne.s32.totalorder %s86, %s87
    %p98 = scmp.eq.s32.totalorder %s14, 0
    %p99 = por %p97, %p98
    %p100 = scmp.ne.s32.totalorder %s86, %s87
    %p101 = scmp.eq.s32.totalorder %s15, 3
    %p102 = por %p100, %p101
    %p104 = scmp.ne.s32.totalorder %s87, %s103
    %p105 = scmp.eq.s32.totalorder %s15, 0
    %p106 = por %p104, %p105
    %s107 = ssub.s32 %s17, %s24
    %s108 = ssub.s32 %s16, %s28
    %s109 = sor.u32 %s107, %s108
    %p110 = scmp.eq.s32.totalorder %s109, 0
    %s112 = sadd.s32 %s111, 1
    %s113 = scalar_select %p110, %s111, %s112
    %p116 = pneg %p110
    %p117 = scmp.eq.s32.totalorder %s9, 3
    %p118 = por %p116, %p117
    %p119 = scmp.ne.s32.totalorder %s111, %s114
    %p120 = scmp.eq.s32.totalorder %s9, 0
    %p121 = por %p119, %p120
    %p122 = scmp.ne.s32.totalorder %s111, %s114
    %p123 = scmp.eq.s32.totalorder %s14, 3
    %p124 = por %p122, %p123
    %p125 = scmp.ne.s32.totalorder %s114, %s115
    %p126 = scmp.eq.s32.totalorder %s14, 0
    %p127 = por %p125, %p126
    %p128 = scmp.ne.s32.totalorder %s114, %s115
    %p129 = scmp.eq.s32.totalorder %s15, 3
    %p130 = por %p128, %p129
    %p132 = scmp.ne.s32.totalorder %s115, %s131
    %p133 = scmp.eq.s32.totalorder %s15, 0
    %p134 = por %p132, %p133
    %p135 = scmp.le.s32.totalorder 1, %s9
    %p136 = scmp.lt.s32.totalorder %s9, 5
    %p137 = pnand %p135, %p136
    %p138 = pneg %p137
    // Predicated region
    $region9: #{_stem.1} parent=5 // pred_check
      _
    $region10: #{_stem.1} parent=5 // pred_check_branch
      %140 = sbr.rel (%p137) target = $region12
    $region11: #{_stem.1} parent=5 // pred_region
      %s141 = ssub.s32 %s9, 1
      // Predicated region
      $region13: #{_stem.1} parent=11 // pred_check
        %p142 = pneg %p73
      $region14: #{_stem.1} parent=11 // pred_check_branch
        %144 = sbr.rel (%p142) target = $region16
      $region15: #{_stem.1} parent=11 // pred_region
        %p145 = scmp.lt.s32.totalorder %s18, 0
        %s146 = scalar_select %p145, %s18, 0
        %s147 = smul.addr %s146, 4
        %s148 = scalar_lea.vmem %s1, %s147
      $region16: #{_stem.1} parent=11 // pred_fallthru
        _
      // Predicated region
      $region17: #{_stem.1} parent=11 // pred_check
        %p149 = pneg %p99
      $region18: #{_stem.1} parent=11 // pred_check_branch
        %151 = sbr.rel (%p149) target = $region20
      $region19: #{_stem.1} parent=11 // pred_region
        %p152 = scmp.lt.s32.totalorder %s18, 0
        %s153 = scalar_select %p152, %s18, 0
        %s154 = scalar_lea.vmem %s2, %s153
      $region20: #{_stem.1} parent=11 // pred_fallthru
        _
    $region12: #{_stem.1} parent=5 // pred_fallthru
      _
    %p155 = scmp.lt.s32.totalorder %s9, 4
    // Predicated region
    $region21: #{_stem.1} parent=5 // pred_check
      %p156 = pneg %p155
    $region22: #{_stem.1} parent=5 // pred_check_branch
      %158 = sbr.rel (%p156) target = $region24
    $region23: #{_stem.1} parent=5 // pred_region
      // Predicated region
      $region25: #{_stem.1} parent=23 // pred_check
        %p159 = pneg %p41
      $region26: #{_stem.1} parent=23 // pred_check_branch
        %161 = sbr.rel (%p159) target = $region28
      $region27: #{_stem.1} parent=23 // pred_region
        %s162 = smul.u32 64, %s17
        %p163 = scmp.lt.s32.totalorder %s162, 255
        %s164 = scalar_select %p163, %s162, 255
        %s165 = smul.addr %s164, 2
        %s166 = smul.addr %s165, 4
        %s167 = scalar_lea.vmem %s0, %s166
        %s168 = smul.u32 64, %s17
      $region28: #{_stem.1} parent=23 // pred_fallthru
        _
    $region24: #{_stem.1} parent=5 // pred_fallthru
      _
    %p169 = scmp.le.s32.totalorder 1, %s9
    %p170 = scmp.lt.s32.totalorder %s9, 5
    %p171 = pnand %p169, %p170
    %p172 = pneg %p171
    // Predicated region
    $region29: #{_stem.1} parent=5 // pred_check
      _
    $region30: #{_stem.1} parent=5 // pred_check_branch
      %174 = sbr.rel (%p171) target = $region32
    $region31: #{_stem.1} parent=5 // pred_region
      %s175 = ssub.s32 %s9, 1
      %s176 = smul.u32 64, %s19
      %p177 = scmp.lt.s32.totalorder %s176, 255
      %s178 = scalar_select %p177, %s176, 255
      %s179 = smul.addr %s178, 2
      %s180 = smul.addr %s179, 4
      %s181 = scalar_lea.vmem %s0, %s180
      %p182 = pneg %p47
      %p183 = pneg %p44
      %p184 = scmp.lt.s32.totalorder %s18, 0
      %s185 = scalar_select %p184, %s18, 0
      %s186 = smul.addr %s185, 4
      %s187 = scalar_lea.vmem %s1, %s186
      %p188 = pneg %p73
      %p189 = pneg %p70
      %p190 = scmp.lt.s32.totalorder %s18, 0
      %s191 = scalar_select %p190, %s18, 0
      %s192 = scalar_lea.vmem %s2, %s191
      %p193 = pneg %p99
      %p194 = pneg %p96
      %p195 = pneg %p127
      %p196 = pneg %p124
      %s197 = smul.u32 64, %s19
      %p198 = scmp.lt.s32.totalorder %s197, 255
      %s199 = scalar_select %p198, %s197, 255
      %p200 = scmp.lt.s32.totalorder %s18, 0
      %s201 = scalar_select %p200, %s18, 0
      %s202 = sadd.s32 %s201, %s199
      %s203 = smul.addr %s202, 4
      %s204 = scalar_lea.vmem %s3, %s203
      %s205 = smul.u32 64, %s19
      %p206 = scmp.lt.s32.totalorder %s205, 255
      %s207 = scalar_select %p206, %s205, 255
      %s208 = smul.addr %s207, 2
      %s209 = smul.addr %s208, 4
      %s210 = scalar_lea.vmem %s0, %s209
      %s211 = smul.u32 64, %s19
      %p212 = scmp.lt.s32.totalorder %s18, 0
      %s213 = scalar_select %p212, %s18, 0
      %s214 = smul.addr %s213, 4
      %s215 = scalar_lea.vmem %s1, %s214
      %p216 = scmp.lt.s32.totalorder %s18, 0
      %s217 = scalar_select %p216, %s18, 0
      %s218 = scalar_lea.vmem %s2, %s217
      %s219 = smul.u32 64, %s19
      %p220 = scmp.lt.s32.totalorder %s219, 255
      %s221 = scalar_select %p220, %s219, 255
      %p222 = scmp.lt.s32.totalorder %s18, 0
      %s223 = scalar_select %p222, %s18, 0
      %s224 = sadd.s32 %s223, %s221
      %s225 = smul.addr %s224, 4
      %s226 = scalar_lea.vmem %s3, %s225
      %s227 = smul.u32 64, %s19
      %v228 = vld [vmem:[%s210] sm:$0xff]
      %v229 = vld [vmem:[%s210 + $0x8] sm:$0xff]
      %v230 = vld [vmem:[%s210 + $0x10] sm:$0xff]
      %v231 = vld [vmem:[%s210 + $0x18] sm:$0xff]
      %v232 = vld [vmem:[%s210 + $0x20] sm:$0xff]
      %v233 = vld [vmem:[%s210 + $0x28] sm:$0xff]
      %v234 = vld [vmem:[%s210 + $0x30] sm:$0xff]
      %v235 = vld [vmem:[%s210 + $0x38] sm:$0xff]
      %v236 = vld [vmem:[%s210 + $0x40] sm:$0xff]
      %v237 = vld [vmem:[%s210 + $0x48] sm:$0xff]
      %v238 = vld [vmem:[%s210 + $0x50] sm:$0xff]
      %v239 = vld [vmem:[%s210 + $0x58] sm:$0xff]
      %v240 = vld [vmem:[%s210 + $0x60] sm:$0xff]
      %v241 = vld [vmem:[%s210 + $0x68] sm:$0xff]
      %v242 = vld [vmem:[%s210 + $0x70] sm:$0xff]
      %v243 = vld [vmem:[%s210 + $0x78] sm:$0xff]
      %v244 = vld [vmem:[%s210 + $0x80] sm:$0xff]
      %v245 = vld [vmem:[%s210 + $0x88] sm:$0xff]
      %v246 = vld [vmem:[%s210 + $0x90] sm:$0xff]
      %v247 = vld [vmem:[%s210 + $0x98] sm:$0xff]
      %v248 = vld [vmem:[%s210 + $0xa0] sm:$0xff]
      %v249 = vld [vmem:[%s210 + $0xa8] sm:$0xff]
      %v250 = vld [vmem:[%s210 + $0xb0] sm:$0xff]
      %v251 = vld [vmem:[%s210 + $0xb8] sm:$0xff]
      %v252 = vld [vmem:[%s210 + $0xc0] sm:$0xff]
      %v253 = vld [vmem:[%s210 + $0xc8] sm:$0xff]
      %v254 = vld [vmem:[%s210 + $0xd0] sm:$0xff]
      %v255 = vld [vmem:[%s210 + $0xd8] sm:$0xff]
      %v256 = vld [vmem:[%s210 + $0xe0] sm:$0xff]
      %v257 = vld [vmem:[%s210 + $0xe8] sm:$0xff]
      %v258 = vld [vmem:[%s210 + $0xf0] sm:$0xff]
      %v259 = vld [vmem:[%s210 + $0xf8] sm:$0xff]
      %v260 = vld [vmem:[%s210 + $0x100] sm:$0xff]
      %v261 = vld [vmem:[%s210 + $0x108] sm:$0xff]
      %v262 = vld [vmem:[%s210 + $0x110] sm:$0xff]
      %v263 = vld [vmem:[%s210 + $0x118] sm:$0xff]
      %v264 = vld [vmem:[%s210 + $0x120] sm:$0xff]
      %v265 = vld [vmem:[%s210 + $0x128] sm:$0xff]
      %v266 = vld [vmem:[%s210 + $0x130] sm:$0xff]
      %v267 = vld [vmem:[%s210 + $0x138] sm:$0xff]
      %v268 = vld [vmem:[%s210 + $0x140] sm:$0xff]
      %v269 = vld [vmem:[%s210 + $0x148] sm:$0xff]
      %v270 = vld [vmem:[%s210 + $0x150] sm:$0xff]
      %v271 = vld [vmem:[%s210 + $0x158] sm:$0xff]
      %v272 = vld [vmem:[%s210 + $0x160] sm:$0xff]
      %v273 = vld [vmem:[%s210 + $0x168] sm:$0xff]
      %v274 = vld [vmem:[%s210 + $0x170] sm:$0xff]
      %v275 = vld [vmem:[%s210 + $0x178] sm:$0xff]
      %v276 = vld [vmem:[%s210 + $0x180] sm:$0xff]
      %v277 = vld [vmem:[%s210 + $0x188] sm:$0xff]
      %v278 = vld [vmem:[%s210 + $0x190] sm:$0xff]
      %v279 = vld [vmem:[%s210 + $0x198] sm:$0xff]
      %v280 = vld [vmem:[%s210 + $0x1a0] sm:$0xff]
      %v281 = vld [vmem:[%s210 + $0x1a8] sm:$0xff]
      %v282 = vld [vmem:[%s210 + $0x1b0] sm:$0xff]
      %v283 = vld [vmem:[%s210 + $0x1b8] sm:$0xff]
      %v284 = vld [vmem:[%s210 + $0x1c0] sm:$0xff]
      %v285 = vld [vmem:[%s210 + $0x1c8] sm:$0xff]
      %v286 = vld [vmem:[%s210 + $0x1d0] sm:$0xff]
      %v287 = vld [vmem:[%s210 + $0x1d8] sm:$0xff]
      %v288 = vld [vmem:[%s210 + $0x1e0] sm:$0xff]
      %v289 = vld [vmem:[%s210 + $0x1e8] sm:$0xff]
      %v290 = vld [vmem:[%s210 + $0x1f0] sm:$0xff]
      %v291 = vld [vmem:[%s210 + $0x1f8] sm:$0xff]
      %v292 = vld [vmem:[%s215] sm:$0xf]
      %v293 = vld [vmem:[%s215 + $0x4] sm:$0xf]
      %v294 = vld [vmem:[%s215 + $0x8] sm:$0xf]
      %v295 = vld [vmem:[%s215 + $0xc] sm:$0xf]
      %v296 = vld [vmem:[%s215 + $0x10] sm:$0xf]
      %v297 = vld [vmem:[%s215 + $0x14] sm:$0xf]
      %v298 = vld [vmem:[%s215 + $0x18] sm:$0xf]
      %v299 = vld [vmem:[%s215 + $0x1c] sm:$0xf]
      %v300 = vld [vmem:[%s215 + $0x20] sm:$0xf]
      %v301 = vld [vmem:[%s215 + $0x24] sm:$0xf]
      %v302 = vld [vmem:[%s215 + $0x28] sm:$0xf]
      %v303 = vld [vmem:[%s215 + $0x2c] sm:$0xf]
      %v304 = vld [vmem:[%s215 + $0x30] sm:$0xf]
      %v305 = vld [vmem:[%s215 + $0x34] sm:$0xf]
      %v306 = vld [vmem:[%s215 + $0x38] sm:$0xf]
      %v307 = vld [vmem:[%s215 + $0x3c] sm:$0xf]
      %v308 = vld [vmem:[%s215 + $0x40] sm:$0xf]
      %v309 = vld [vmem:[%s215 + $0x44] sm:$0xf]
      %v310 = vld [vmem:[%s215 + $0x48] sm:$0xf]
      %v311 = vld [vmem:[%s215 + $0x4c] sm:$0xf]
      %v312 = vld [vmem:[%s215 + $0x50] sm:$0xf]
      %v313 = vld [vmem:[%s215 + $0x54] sm:$0xf]
      %v314 = vld [vmem:[%s215 + $0x58] sm:$0xf]
      %v315 = vld [vmem:[%s215 + $0x5c] sm:$0xf]
      %v316 = vld [vmem:[%s215 + $0x60] sm:$0xf]
      %v317 = vld [vmem:[%s215 + $0x64] sm:$0xf]
      %v318 = vld [vmem:[%s215 + $0x68] sm:$0xf]
      %v319 = vld [vmem:[%s215 + $0x6c] sm:$0xf]
      %v320 = vld [vmem:[%s215 + $0x70] sm:$0xf]
      %v321 = vld [vmem:[%s215 + $0x74] sm:$0xf]
      %v322 = vld [vmem:[%s215 + $0x78] sm:$0xf]
      %v323 = vld [vmem:[%s215 + $0x7c] sm:$0xf]
      %v324 = vld [vmem:[%s218] sm:$0x1]
      %v326 = vperm.slane %v324, 0
      %v392 = vunpack.c.l.b16 %v228
      %v393 = vunpack.c.h.b16 %v228
      %v394 = vunpack.c.l.b16 %v229
      %v395 = vunpack.c.h.b16 %v229
      %v396 = vunpack.c.l.b16 %v230
      %v397 = vunpack.c.h.b16 %v230
      %v398 = vunpack.c.l.b16 %v231
      %v399 = vunpack.c.h.b16 %v231
      %v400 = vunpack.c.l.b16 %v232
      %v401 = vunpack.c.h.b16 %v232
      %v402 = vunpack.c.l.b16 %v233
      %v403 = vunpack.c.h.b16 %v233
      %v404 = vunpack.c.l.b16 %v234
      %v405 = vunpack.c.h.b16 %v234
      %v406 = vunpack.c.l.b16 %v235
      %v407 = vunpack.c.h.b16 %v235
      %v408 = vunpack.c.l.b16 %v236
      %v409 = vunpack.c.h.b16 %v236
      %v410 = vunpack.c.l.b16 %v237
      %v411 = vunpack.c.h.b16 %v237
      %v412 = vunpack.c.l.b16 %v238
      %v413 = vunpack.c.h.b16 %v238
      %v414 = vunpack.c.l.b16 %v239
      %v415 = vunpack.c.h.b16 %v239
      %v416 = vunpack.c.l.b16 %v240
      %v417 = vunpack.c.h.b16 %v240
      %v418 = vunpack.c.l.b16 %v241
      %v419 = vunpack.c.h.b16 %v241
      %v420 = vunpack.c.l.b16 %v242
      %v421 = vunpack.c.h.b16 %v242
      %v422 = vunpack.c.l.b16 %v243
      %v423 = vunpack.c.h.b16 %v243
      %v424 = vunpack.c.l.b16 %v244
      %v425 = vunpack.c.h.b16 %v244
      %v426 = vunpack.c.l.b16 %v245
      %v427 = vunpack.c.h.b16 %v245
      %v428 = vunpack.c.l.b16 %v246
      %v429 = vunpack.c.h.b16 %v246
      %v430 = vunpack.c.l.b16 %v247
      %v431 = vunpack.c.h.b16 %v247
      %v432 = vunpack.c.l.b16 %v248
      %v433 = vunpack.c.h.b16 %v248
      %v434 = vunpack.c.l.b16 %v249
      %v435 = vunpack.c.h.b16 %v249
      %v436 = vunpack.c.l.b16 %v250
      %v437 = vunpack.c.h.b16 %v250
      %v438 = vunpack.c.l.b16 %v251
      %v439 = vunpack.c.h.b16 %v251
      %v440 = vunpack.c.l.b16 %v252
      %v441 = vunpack.c.h.b16 %v252
      %v442 = vunpack.c.l.b16 %v253
      %v443 = vunpack.c.h.b16 %v253
      %v444 = vunpack.c.l.b16 %v254
      %v445 = vunpack.c.h.b16 %v254
      %v446 = vunpack.c.l.b16 %v255
      %v447 = vunpack.c.h.b16 %v255
      %v448 = vunpack.c.l.b16 %v256
      %v449 = vunpack.c.h.b16 %v256
      %v450 = vunpack.c.l.b16 %v257
      %v451 = vunpack.c.h.b16 %v257
      %v452 = vunpack.c.l.b16 %v258
      %v453 = vunpack.c.h.b16 %v258
      %v454 = vunpack.c.l.b16 %v259
      %v455 = vunpack.c.h.b16 %v259
      %v456 = vunpack.c.l.b16 %v260
      %v457 = vunpack.c.h.b16 %v260
      %v458 = vunpack.c.l.b16 %v261
      %v459 = vunpack.c.h.b16 %v261
      %v460 = vunpack.c.l.b16 %v262
      %v461 = vunpack.c.h.b16 %v262
      %v462 = vunpack.c.l.b16 %v263
      %v463 = vunpack.c.h.b16 %v263
      %v464 = vunpack.c.l.b16 %v264
      %v465 = vunpack.c.h.b16 %v264
      %v466 = vunpack.c.l.b16 %v265
      %v467 = vunpack.c.h.b16 %v265
      %v468 = vunpack.c.l.b16 %v266
      %v469 = vunpack.c.h.b16 %v266
      %v470 = vunpack.c.l.b16 %v267
      %v471 = vunpack.c.h.b16 %v267
      %v472 = vunpack.c.l.b16 %v268
      %v473 = vunpack.c.h.b16 %v268
      %v474 = vunpack.c.l.b16 %v269
      %v475 = vunpack.c.h.b16 %v269
      %v476 = vunpack.c.l.b16 %v270
      %v477 = vunpack.c.h.b16 %v270
      %v478 = vunpack.c.l.b16 %v271
      %v479 = vunpack.c.h.b16 %v271
      %v480 = vunpack.c.l.b16 %v272
      %v481 = vunpack.c.h.b16 %v272
      %v482 = vunpack.c.l.b16 %v273
      %v483 = vunpack.c.h.b16 %v273
      %v484 = vunpack.c.l.b16 %v274
      %v485 = vunpack.c.h.b16 %v274
      %v486 = vunpack.c.l.b16 %v275
      %v487 = vunpack.c.h.b16 %v275
      %v488 = vunpack.c.l.b16 %v276
      %v489 = vunpack.c.h.b16 %v276
      %v490 = vunpack.c.l.b16 %v277
      %v491 = vunpack.c.h.b16 %v277
      %v492 = vunpack.c.l.b16 %v278
      %v493 = vunpack.c.h.b16 %v278
      %v494 = vunpack.c.l.b16 %v279
      %v495 = vunpack.c.h.b16 %v279
      %v496 = vunpack.c.l.b16 %v280
      %v497 = vunpack.c.h.b16 %v280
      %v498 = vunpack.c.l.b16 %v281
      %v499 = vunpack.c.h.b16 %v281
      %v500 = vunpack.c.l.b16 %v282
      %v501 = vunpack.c.h.b16 %v282
      %v502 = vunpack.c.l.b16 %v283
      %v503 = vunpack.c.h.b16 %v283
      %v504 = vunpack.c.l.b16 %v284
      %v505 = vunpack.c.h.b16 %v284
      %v506 = vunpack.c.l.b16 %v285
      %v507 = vunpack.c.h.b16 %v285
      %v508 = vunpack.c.l.b16 %v286
      %v509 = vunpack.c.h.b16 %v286
      %v510 = vunpack.c.l.b16 %v287
      %v511 = vunpack.c.h.b16 %v287
      %v512 = vunpack.c.l.b16 %v288
      %v513 = vunpack.c.h.b16 %v288
      %v514 = vunpack.c.l.b16 %v289
      %v515 = vunpack.c.h.b16 %v289
      %v516 = vunpack.c.l.b16 %v290
      %v517 = vunpack.c.h.b16 %v290
      %v518 = vunpack.c.l.b16 %v291
      %v519 = vunpack.c.h.b16 %v291
      %v520 = vpack.c.b16 %v394, %v392
      %v521 = vpack.c.b16 %v395, %v393
      %v522 = vpack.c.b16 %v398, %v396
      %v523 = vpack.c.b16 %v399, %v397
      %v524 = vpack.c.b16 %v402, %v400
      %v525 = vpack.c.b16 %v403, %v401
      %v526 = vpack.c.b16 %v406, %v404
      %v527 = vpack.c.b16 %v407, %v405
      %v528 = vpack.c.b16 %v410, %v408
      %v529 = vpack.c.b16 %v411, %v409
      %v530 = vpack.c.b16 %v414, %v412
      %v531 = vpack.c.b16 %v415, %v413
      %v532 = vpack.c.b16 %v418, %v416
      %v533 = vpack.c.b16 %v419, %v417
      %v534 = vpack.c.b16 %v422, %v420
      %v535 = vpack.c.b16 %v423, %v421
      %v536 = vpack.c.b16 %v426, %v424
      %v537 = vpack.c.b16 %v427, %v425
      %v538 = vpack.c.b16 %v430, %v428
      %v539 = vpack.c.b16 %v431, %v429
      %v540 = vpack.c.b16 %v434, %v432
      %v541 = vpack.c.b16 %v435, %v433
      %v542 = vpack.c.b16 %v438, %v436
      %v543 = vpack.c.b16 %v439, %v437
      %v544 = vpack.c.b16 %v442, %v440
      %v545 = vpack.c.b16 %v443, %v441
      %v546 = vpack.c.b16 %v446, %v444
      %v547 = vpack.c.b16 %v447, %v445
      %v548 = vpack.c.b16 %v450, %v448
      %v549 = vpack.c.b16 %v451, %v449
      %v550 = vpack.c.b16 %v454, %v452
      %v551 = vpack.c.b16 %v455, %v453
      %v552 = vpack.c.b16 %v458, %v456
      %v553 = vpack.c.b16 %v459, %v457
      %v554 = vpack.c.b16 %v462, %v460
      %v555 = vpack.c.b16 %v463, %v461
      %v556 = vpack.c.b16 %v466, %v464
      %v557 = vpack.c.b16 %v467, %v465
      %v558 = vpack.c.b16 %v470, %v468
      %v559 = vpack.c.b16 %v471, %v469
      %v560 = vpack.c.b16 %v474, %v472
      %v561 = vpack.c.b16 %v475, %v473
      %v562 = vpack.c.b16 %v478, %v476
      %v563 = vpack.c.b16 %v479, %v477
      %v564 = vpack.c.b16 %v482, %v480
      %v565 = vpack.c.b16 %v483, %v481
      %v566 = vpack.c.b16 %v486, %v484
      %v567 = vpack.c.b16 %v487, %v485
      %v568 = vpack.c.b16 %v490, %v488
      %v569 = vpack.c.b16 %v491, %v489
      %v570 = vpack.c.b16 %v494, %v492
      %v571 = vpack.c.b16 %v495, %v493
      %v572 = vpack.c.b16 %v498, %v496
      %v573 = vpack.c.b16 %v499, %v497
      %v574 = vpack.c.b16 %v502, %v500
      %v575 = vpack.c.b16 %v503, %v501
      %v576 = vpack.c.b16 %v506, %v504
      %v577 = vpack.c.b16 %v507, %v505
      %v578 = vpack.c.b16 %v510, %v508
      %v579 = vpack.c.b16 %v511, %v509
      %v580 = vpack.c.b16 %v514, %v512
      %v581 = vpack.c.b16 %v515, %v513
      %v582 = vpack.c.b16 %v518, %v516
      %v583 = vpack.c.b16 %v519, %v517
      %v680 = vunpack.c.l.b16 %v292
      %v681 = vunpack.c.l.b16 %v293
      %v682 = vunpack.c.l.b16 %v294
      %v683 = vunpack.c.l.b16 %v295
      %v684 = vunpack.c.l.b16 %v296
      %v685 = vunpack.c.l.b16 %v297
      %v686 = vunpack.c.l.b16 %v298
      %v687 = vunpack.c.l.b16 %v299
      %v688 = vunpack.c.l.b16 %v300
      %v689 = vunpack.c.l.b16 %v301
      %v690 = vunpack.c.l.b16 %v302
      %v691 = vunpack.c.l.b16 %v303
      %v692 = vunpack.c.l.b16 %v304
      %v693 = vunpack.c.l.b16 %v305
      %v694 = vunpack.c.l.b16 %v306
      %v695 = vunpack.c.l.b16 %v307
      %v696 = vunpack.c.l.b16 %v308
      %v697 = vunpack.c.l.b16 %v309
      %v698 = vunpack.c.l.b16 %v310
      %v699 = vunpack.c.l.b16 %v311
      %v700 = vunpack.c.l.b16 %v312
      %v701 = vunpack.c.l.b16 %v313
      %v702 = vunpack.c.l.b16 %v314
      %v703 = vunpack.c.l.b16 %v315
      %v704 = vunpack.c.l.b16 %v316
      %v705 = vunpack.c.l.b16 %v317
      %v706 = vunpack.c.l.b16 %v318
      %v707 = vunpack.c.l.b16 %v319
      %v708 = vunpack.c.l.b16 %v320
      %v709 = vunpack.c.l.b16 %v321
      %v710 = vunpack.c.l.b16 %v322
      %v711 = vunpack.c.l.b16 %v323
      %v712 = vpack.c.b16 %v681, %v680
      %v713 = vpack.c.b16 %v683, %v682
      %v714 = vpack.c.b16 %v685, %v684
      %v715 = vpack.c.b16 %v687, %v686
      %v716 = vpack.c.b16 %v689, %v688
      %v717 = vpack.c.b16 %v691, %v690
      %v718 = vpack.c.b16 %v693, %v692
      %v719 = vpack.c.b16 %v695, %v694
      %v720 = vpack.c.b16 %v697, %v696
      %v721 = vpack.c.b16 %v699, %v698
      %v722 = vpack.c.b16 %v701, %v700
      %v723 = vpack.c.b16 %v703, %v702
      %v724 = vpack.c.b16 %v705, %v704
      %v725 = vpack.c.b16 %v707, %v706
      %v726 = vpack.c.b16 %v709, %v708
      %v727 = vpack.c.b16 %v711, %v710
      %744 = vmatpush.bf16.msra.mxu0 %v719
      %745 = vmatpush.bf16.msra.mxu0 %v718
      %746 = vmatpush.bf16.msra.mxu0 %v717
      %747 = vmatpush.bf16.msra.mxu0 %v716
      %748 = vmatpush.bf16.msra.mxu0 %v715
      %749 = vmatpush.bf16.msra.mxu0 %v714
      %750 = vmatpush.bf16.msra.mxu0 %v713
      %751 = vmatpush.bf16.msra.mxu0 %v712
      %752 = vmatmul.bf16.gmra.mxu0 %v520
      %v753 = vpop.f32.mrf.mxu0
      %v754 = vadd.f32 %v326, %v753
      %v755 = vpop.f32.mrf.mxu0
      %v756 = vadd.f32 %v326, %v755
      %757 = vmatmul.bf16.gmra.mxu0 %v522
      %v758 = vpop.f32.mrf.mxu0
      %v759 = vadd.f32 %v326, %v758
      %v760 = vpop.f32.mrf.mxu0
      %v761 = vadd.f32 %v326, %v760
      %762 = vmatmul.bf16.gmra.mxu0 %v524
      %v763 = vpop.f32.mrf.mxu0
      %v764 = vadd.f32 %v326, %v763
      %v765 = vpop.f32.mrf.mxu0
      %v766 = vadd.f32 %v326, %v765
      %767 = vmatmul.bf16.gmra.mxu0 %v526
      %v768 = vpop.f32.mrf.mxu0
      %v769 = vadd.f32 %v326, %v768
      %v770 = vpop.f32.mrf.mxu0
      %v771 = vadd.f32 %v326, %v770
      %772 = vmatmul.bf16.gmra.mxu0 %v528
      %v773 = vpop.f32.mrf.mxu0
      %v774 = vadd.f32 %v326, %v773
      %v775 = vpop.f32.mrf.mxu0
      %v776 = vadd.f32 %v326, %v775
      %777 = vmatmul.bf16.gmra.mxu0 %v530
      %v778 = vpop.f32.mrf.mxu0
      %v779 = vadd.f32 %v326, %v778
      %v780 = vpop.f32.mrf.mxu0
      %v781 = vadd.f32 %v326, %v780
      %782 = vmatmul.bf16.gmra.mxu0 %v532
      %v783 = vpop.f32.mrf.mxu0
      %v784 = vadd.f32 %v326, %v783
      %v785 = vpop.f32.mrf.mxu0
      %v786 = vadd.f32 %v326, %v785
      %787 = vmatmul.bf16.gmra.mxu0 %v534
      %v788 = vpop.f32.mrf.mxu0
      %v789 = vadd.f32 %v326, %v788
      %v790 = vpop.f32.mrf.mxu0
      %v791 = vadd.f32 %v326, %v790
      %792 = vmatmul.bf16.gmra.mxu0 %v536
      %v793 = vpop.f32.mrf.mxu0
      %v794 = vadd.f32 %v326, %v793
      %v795 = vpop.f32.mrf.mxu0
      %v796 = vadd.f32 %v326, %v795
      %797 = vmatmul.bf16.gmra.mxu0 %v538
      %v798 = vpop.f32.mrf.mxu0
      %v799 = vadd.f32 %v326, %v798
      %v800 = vpop.f32.mrf.mxu0
      %v801 = vadd.f32 %v326, %v800
      %802 = vmatmul.bf16.gmra.mxu0 %v540
      %v803 = vpop.f32.mrf.mxu0
      %v804 = vadd.f32 %v326, %v803
      %v805 = vpop.f32.mrf.mxu0
      %v806 = vadd.f32 %v326, %v805
      %807 = vmatmul.bf16.gmra.mxu0 %v542
      %v808 = vpop.f32.mrf.mxu0
      %v809 = vadd.f32 %v326, %v808
      %v810 = vpop.f32.mrf.mxu0
      %v811 = vadd.f32 %v326, %v810
      %812 = vmatmul.bf16.gmra.mxu0 %v544
      %v813 = vpop.f32.mrf.mxu0
      %v814 = vadd.f32 %v326, %v813
      %v815 = vpop.f32.mrf.mxu0
      %v816 = vadd.f32 %v326, %v815
      %817 = vmatmul.bf16.gmra.mxu0 %v546
      %v818 = vpop.f32.mrf.mxu0
      %v819 = vadd.f32 %v326, %v818
      %v820 = vpop.f32.mrf.mxu0
      %v821 = vadd.f32 %v326, %v820
      %822 = vmatmul.bf16.gmra.mxu0 %v548
      %v823 = vpop.f32.mrf.mxu0
      %v824 = vadd.f32 %v326, %v823
      %v825 = vpop.f32.mrf.mxu0
      %v826 = vadd.f32 %v326, %v825
      %827 = vmatmul.bf16.gmra.mxu0 %v550
      %v828 = vpop.f32.mrf.mxu0
      %v829 = vadd.f32 %v326, %v828
      %v830 = vpop.f32.mrf.mxu0
      %v831 = vadd.f32 %v326, %v830
      %832 = vmatmul.bf16.gmra.mxu0 %v552
      %v833 = vpop.f32.mrf.mxu0
      %v834 = vadd.f32 %v326, %v833
      %v835 = vpop.f32.mrf.mxu0
      %v836 = vadd.f32 %v326, %v835
      %837 = vmatmul.bf16.gmra.mxu0 %v554
      %v838 = vpop.f32.mrf.mxu0
      %v839 = vadd.f32 %v326, %v838
      %v840 = vpop.f32.mrf.mxu0
      %v841 = vadd.f32 %v326, %v840
      %842 = vmatmul.bf16.gmra.mxu0 %v556
      %v843 = vpop.f32.mrf.mxu0
      %v844 = vadd.f32 %v326, %v843
      %v845 = vpop.f32.mrf.mxu0
      %v846 = vadd.f32 %v326, %v845
      %847 = vmatmul.bf16.gmra.mxu0 %v558
      %v848 = vpop.f32.mrf.mxu0
      %v849 = vadd.f32 %v326, %v848
      %v850 = vpop.f32.mrf.mxu0
      %v851 = vadd.f32 %v326, %v850
      %852 = vmatmul.bf16.gmra.mxu0 %v560
      %v853 = vpop.f32.mrf.mxu0
      %v854 = vadd.f32 %v326, %v853
      %v855 = vpop.f32.mrf.mxu0
      %v856 = vadd.f32 %v326, %v855
      %857 = vmatmul.bf16.gmra.mxu0 %v562
      %v858 = vpop.f32.mrf.mxu0
      %v859 = vadd.f32 %v326, %v858
      %v860 = vpop.f32.mrf.mxu0
      %v861 = vadd.f32 %v326, %v860
      %862 = vmatmul.bf16.gmra.mxu0 %v564
      %v863 = vpop.f32.mrf.mxu0
      %v864 = vadd.f32 %v326, %v863
      %v865 = vpop.f32.mrf.mxu0
      %v866 = vadd.f32 %v326, %v865
      %867 = vmatmul.bf16.gmra.mxu0 %v566
      %v868 = vpop.f32.mrf.mxu0
      %v869 = vadd.f32 %v326, %v868
      %v870 = vpop.f32.mrf.mxu0
      %v871 = vadd.f32 %v326, %v870
      %872 = vmatmul.bf16.gmra.mxu0 %v568
      %v873 = vpop.f32.mrf.mxu0
      %v874 = vadd.f32 %v326, %v873
      %v875 = vpop.f32.mrf.mxu0
      %v876 = vadd.f32 %v326, %v875
      %877 = vmatmul.bf16.gmra.mxu0 %v570
      %v878 = vpop.f32.mrf.mxu0
      %v879 = vadd.f32 %v326, %v878
      %v880 = vpop.f32.mrf.mxu0
      %v881 = vadd.f32 %v326, %v880
      %882 = vmatmul.bf16.gmra.mxu0 %v572
      %v883 = vpop.f32.mrf.mxu0
      %v884 = vadd.f32 %v326, %v883
      %v885 = vpop.f32.mrf.mxu0
      %v886 = vadd.f32 %v326, %v885
      %887 = vmatmul.bf16.gmra.mxu0 %v574
      %v888 = vpop.f32.mrf.mxu0
      %v889 = vadd.f32 %v326, %v888
      %v890 = vpop.f32.mrf.mxu0
      %v891 = vadd.f32 %v326, %v890
      %892 = vmatmul.bf16.gmra.mxu0 %v576
      %v893 = vpop.f32.mrf.mxu0
      %v894 = vadd.f32 %v326, %v893
      %v895 = vpop.f32.mrf.mxu0
      %v896 = vadd.f32 %v326, %v895
      %897 = vmatmul.bf16.gmra.mxu0 %v578
      %v898 = vpop.f32.mrf.mxu0
      %v899 = vadd.f32 %v326, %v898
      %v900 = vpop.f32.mrf.mxu0
      %v901 = vadd.f32 %v326, %v900
      %902 = vmatmul.bf16.gmra.mxu0 %v580
      %v903 = vpop.f32.mrf.mxu0
      %v904 = vadd.f32 %v326, %v903
      %v905 = vpop.f32.mrf.mxu0
      %v906 = vadd.f32 %v326, %v905
      %907 = vmatmul.bf16.gmra.mxu0 %v582
      %v908 = vpop.f32.mrf.mxu0
      %v909 = vadd.f32 %v326, %v908
      %v910 = vpop.f32.mrf.mxu0
      %v911 = vadd.f32 %v326, %v910
      %912 = vdwg.mxu0
      %913 = vmatpush.bf16.msra.mxu0 %v727
      %914 = vmatpush.bf16.msra.mxu0 %v726
      %915 = vmatpush.bf16.msra.mxu0 %v725
      %916 = vmatpush.bf16.msra.mxu0 %v724
      %917 = vmatpush.bf16.msra.mxu0 %v723
      %918 = vmatpush.bf16.msra.mxu0 %v722
      %919 = vmatpush.bf16.msra.mxu0 %v721
      %920 = vmatpush.bf16.msra.mxu0 %v720
      %921 = vmatmul.bf16.gmra.mxu0 %v521
      %v922 = vpop.f32.mrf.mxu0
      %v923 = vadd.f32 %v754, %v922
      %v924 = vpop.f32.mrf.mxu0
      %v925 = vadd.f32 %v756, %v924
      %926 = vmatmul.bf16.gmra.mxu0 %v523
      %v927 = vpop.f32.mrf.mxu0
      %v928 = vadd.f32 %v759, %v927
      %v929 = vpop.f32.mrf.mxu0
      %v930 = vadd.f32 %v761, %v929
      %931 = vmatmul.bf16.gmra.mxu0 %v525
      %v932 = vpop.f32.mrf.mxu0
      %v933 = vadd.f32 %v764, %v932
      %v934 = vpop.f32.mrf.mxu0
      %v935 = vadd.f32 %v766, %v934
      %936 = vmatmul.bf16.gmra.mxu0 %v527
      %v937 = vpop.f32.mrf.mxu0
      %v938 = vadd.f32 %v769, %v937
      %v939 = vpop.f32.mrf.mxu0
      %v940 = vadd.f32 %v771, %v939
      %941 = vmatmul.bf16.gmra.mxu0 %v529
      %v942 = vpop.f32.mrf.mxu0
      %v943 = vadd.f32 %v774, %v942
      %v944 = vpop.f32.mrf.mxu0
      %v945 = vadd.f32 %v776, %v944
      %946 = vmatmul.bf16.gmra.mxu0 %v531
      %v947 = vpop.f32.mrf.mxu0
      %v948 = vadd.f32 %v779, %v947
      %v949 = vpop.f32.mrf.mxu0
      %v950 = vadd.f32 %v781, %v949
      %951 = vmatmul.bf16.gmra.mxu0 %v533
      %v952 = vpop.f32.mrf.mxu0
      %v953 = vadd.f32 %v784, %v952
      %v954 = vpop.f32.mrf.mxu0
      %v955 = vadd.f32 %v786, %v954
      %956 = vmatmul.bf16.gmra.mxu0 %v535
      %v957 = vpop.f32.mrf.mxu0
      %v958 = vadd.f32 %v789, %v957
      %v959 = vpop.f32.mrf.mxu0
      %v960 = vadd.f32 %v791, %v959
      %961 = vmatmul.bf16.gmra.mxu0 %v537
      %v962 = vpop.f32.mrf.mxu0
      %v963 = vadd.f32 %v794, %v962
      %v964 = vpop.f32.mrf.mxu0
      %v965 = vadd.f32 %v796, %v964
      %966 = vmatmul.bf16.gmra.mxu0 %v539
      %v967 = vpop.f32.mrf.mxu0
      %v968 = vadd.f32 %v799, %v967
      %v969 = vpop.f32.mrf.mxu0
      %v970 = vadd.f32 %v801, %v969
      %971 = vmatmul.bf16.gmra.mxu0 %v541
      %v972 = vpop.f32.mrf.mxu0
      %v973 = vadd.f32 %v804, %v972
      %v974 = vpop.f32.mrf.mxu0
      %v975 = vadd.f32 %v806, %v974
      %976 = vmatmul.bf16.gmra.mxu0 %v543
      %v977 = vpop.f32.mrf.mxu0
      %v978 = vadd.f32 %v809, %v977
      %v979 = vpop.f32.mrf.mxu0
      %v980 = vadd.f32 %v811, %v979
      %981 = vmatmul.bf16.gmra.mxu0 %v545
      %v982 = vpop.f32.mrf.mxu0
      %v983 = vadd.f32 %v814, %v982
      %v984 = vpop.f32.mrf.mxu0
      %v985 = vadd.f32 %v816, %v984
      %986 = vmatmul.bf16.gmra.mxu0 %v547
      %v987 = vpop.f32.mrf.mxu0
      %v988 = vadd.f32 %v819, %v987
      %v989 = vpop.f32.mrf.mxu0
      %v990 = vadd.f32 %v821, %v989
      %991 = vmatmul.bf16.gmra.mxu0 %v549
      %v992 = vpop.f32.mrf.mxu0
      %v993 = vadd.f32 %v824, %v992
      %v994 = vpop.f32.mrf.mxu0
      %v995 = vadd.f32 %v826, %v994
      %996 = vmatmul.bf16.gmra.mxu0 %v551
      %v997 = vpop.f32.mrf.mxu0
      %v998 = vadd.f32 %v829, %v997
      %v999 = vpop.f32.mrf.mxu0
      %v1000 = vadd.f32 %v831, %v999
      %1001 = vmatmul.bf16.gmra.mxu0 %v553
      %v1002 = vpop.f32.mrf.mxu0
      %v1003 = vadd.f32 %v834, %v1002
      %v1004 = vpop.f32.mrf.mxu0
      %v1005 = vadd.f32 %v836, %v1004
      %1006 = vmatmul.bf16.gmra.mxu0 %v555
      %v1007 = vpop.f32.mrf.mxu0
      %v1008 = vadd.f32 %v839, %v1007
      %v1009 = vpop.f32.mrf.mxu0
      %v1010 = vadd.f32 %v841, %v1009
      %1011 = vmatmul.bf16.gmra.mxu0 %v557
      %v1012 = vpop.f32.mrf.mxu0
      %v1013 = vadd.f32 %v844, %v1012
      %v1014 = vpop.f32.mrf.mxu0
      %v1015 = vadd.f32 %v846, %v1014
      %1016 = vmatmul.bf16.gmra.mxu0 %v559
      %v1017 = vpop.f32.mrf.mxu0
      %v1018 = vadd.f32 %v849, %v1017
      %v1019 = vpop.f32.mrf.mxu0
      %v1020 = vadd.f32 %v851, %v1019
      %1021 = vmatmul.bf16.gmra.mxu0 %v561
      %v1022 = vpop.f32.mrf.mxu0
      %v1023 = vadd.f32 %v854, %v1022
      %v1024 = vpop.f32.mrf.mxu0
      %v1025 = vadd.f32 %v856, %v1024
      %1026 = vmatmul.bf16.gmra.mxu0 %v563
      %v1027 = vpop.f32.mrf.mxu0
      %v1028 = vadd.f32 %v859, %v1027
      %v1029 = vpop.f32.mrf.mxu0
      %v1030 = vadd.f32 %v861, %v1029
      %1031 = vmatmul.bf16.gmra.mxu0 %v565
      %v1032 = vpop.f32.mrf.mxu0
      %v1033 = vadd.f32 %v864, %v1032
      %v1034 = vpop.f32.mrf.mxu0
      %v1035 = vadd.f32 %v866, %v1034
      %1036 = vmatmul.bf16.gmra.mxu0 %v567
      %v1037 = vpop.f32.mrf.mxu0
      %v1038 = vadd.f32 %v869, %v1037
      %v1039 = vpop.f32.mrf.mxu0
      %v1040 = vadd.f32 %v871, %v1039
      %1041 = vmatmul.bf16.gmra.mxu0 %v569
      %v1042 = vpop.f32.mrf.mxu0
      %v1043 = vadd.f32 %v874, %v1042
      %v1044 = vpop.f32.mrf.mxu0
      %v1045 = vadd.f32 %v876, %v1044
      %1046 = vmatmul.bf16.gmra.mxu0 %v571
      %v1047 = vpop.f32.mrf.mxu0
      %v1048 = vadd.f32 %v879, %v1047
      %v1049 = vpop.f32.mrf.mxu0
      %v1050 = vadd.f32 %v881, %v1049
      %1051 = vmatmul.bf16.gmra.mxu0 %v573
      %v1052 = vpop.f32.mrf.mxu0
      %v1053 = vadd.f32 %v884, %v1052
      %v1054 = vpop.f32.mrf.mxu0
      %v1055 = vadd.f32 %v886, %v1054
      %1056 = vmatmul.bf16.gmra.mxu0 %v575
      %v1057 = vpop.f32.mrf.mxu0
      %v1058 = vadd.f32 %v889, %v1057
      %v1059 = vpop.f32.mrf.mxu0
      %v1060 = vadd.f32 %v891, %v1059
      %1061 = vmatmul.bf16.gmra.mxu0 %v577
      %v1062 = vpop.f32.mrf.mxu0
      %v1063 = vadd.f32 %v894, %v1062
      %v1064 = vpop.f32.mrf.mxu0
      %v1065 = vadd.f32 %v896, %v1064
      %1066 = vmatmul.bf16.gmra.mxu0 %v579
      %v1067 = vpop.f32.mrf.mxu0
      %v1068 = vadd.f32 %v899, %v1067
      %v1069 = vpop.f32.mrf.mxu0
      %v1070 = vadd.f32 %v901, %v1069
      %1071 = vmatmul.bf16.gmra.mxu0 %v581
      %v1072 = vpop.f32.mrf.mxu0
      %v1073 = vadd.f32 %v904, %v1072
      %v1074 = vpop.f32.mrf.mxu0
      %v1075 = vadd.f32 %v906, %v1074
      %1076 = vmatmul.bf16.gmra.mxu0 %v583
      %v1077 = vpop.f32.mrf.mxu0
      %v1078 = vadd.f32 %v909, %v1077
      %v1079 = vpop.f32.mrf.mxu0
      %v1080 = vadd.f32 %v911, %v1079
      %1081 = vdwg.mxu0
      %v1082 = vmax.f32 %v923, 0.0
      %v1083 = vmax.f32 %v925, 0.0
      %v1084 = vmax.f32 %v928, 0.0
      %v1085 = vmax.f32 %v930, 0.0
      %v1086 = vmax.f32 %v933, 0.0
      %v1087 = vmax.f32 %v935, 0.0
      %v1088 = vmax.f32 %v938, 0.0
      %v1089 = vmax.f32 %v940, 0.0
      %v1090 = vmax.f32 %v943, 0.0
      %v1091 = vmax.f32 %v945, 0.0
      %v1092 = vmax.f32 %v948, 0.0
      %v1093 = vmax.f32 %v950, 0.0
      %v1094 = vmax.f32 %v953, 0.0
      %v1095 = vmax.f32 %v955, 0.0
      %v1096 = vmax.f32 %v958, 0.0
      %v1097 = vmax.f32 %v960, 0.0
      %v1098 = vmax.f32 %v963, 0.0
      %v1099 = vmax.f32 %v965, 0.0
      %v1100 = vmax.f32 %v968, 0.0
      %v1101 = vmax.f32 %v970, 0.0
      %v1102 = vmax.f32 %v973, 0.0
      %v1103 = vmax.f32 %v975, 0.0
      %v1104 = vmax.f32 %v978, 0.0
      %v1105 = vmax.f32 %v980, 0.0
      %v1106 = vmax.f32 %v983, 0.0
      %v1107 = vmax.f32 %v985, 0.0
      %v1108 = vmax.f32 %v988, 0.0
      %v1109 = vmax.f32 %v990, 0.0
      %v1110 = vmax.f32 %v993, 0.0
      %v1111 = vmax.f32 %v995, 0.0
      %v1112 = vmax.f32 %v998, 0.0
      %v1113 = vmax.f32 %v1000, 0.0
      %v1114 = vmax.f32 %v1003, 0.0
      %v1115 = vmax.f32 %v1005, 0.0
      %v1116 = vmax.f32 %v1008, 0.0
      %v1117 = vmax.f32 %v1010, 0.0
      %v1118 = vmax.f32 %v1013, 0.0
      %v1119 = vmax.f32 %v1015, 0.0
      %v1120 = vmax.f32 %v1018, 0.0
      %v1121 = vmax.f32 %v1020, 0.0
      %v1122 = vmax.f32 %v1023, 0.0
      %v1123 = vmax.f32 %v1025, 0.0
      %v1124 = vmax.f32 %v1028, 0.0
      %v1125 = vmax.f32 %v1030, 0.0
      %v1126 = vmax.f32 %v1033, 0.0
      %v1127 = vmax.f32 %v1035, 0.0
      %v1128 = vmax.f32 %v1038, 0.0
      %v1129 = vmax.f32 %v1040, 0.0
      %v1130 = vmax.f32 %v1043, 0.0
      %v1131 = vmax.f32 %v1045, 0.0
      %v1132 = vmax.f32 %v1048, 0.0
      %v1133 = vmax.f32 %v1050, 0.0
      %v1134 = vmax.f32 %v1053, 0.0
      %v1135 = vmax.f32 %v1055, 0.0
      %v1136 = vmax.f32 %v1058, 0.0
      %v1137 = vmax.f32 %v1060, 0.0
      %v1138 = vmax.f32 %v1063, 0.0
      %v1139 = vmax.f32 %v1065, 0.0
      %v1140 = vmax.f32 %v1068, 0.0
      %v1141 = vmax.f32 %v1070, 0.0
      %v1142 = vmax.f32 %v1073, 0.0
      %v1143 = vmax.f32 %v1075, 0.0
      %v1144 = vmax.f32 %v1078, 0.0
      %v1145 = vmax.f32 %v1080, 0.0
      %v1146 = vpack.c.bf16 %v1082, %v1082
      %v1147 = vpack.c.bf16 %v1083, %v1083
      %v1148 = vpack.c.bf16 %v1084, %v1084
      %v1149 = vpack.c.bf16 %v1085, %v1085
      %v1150 = vpack.c.bf16 %v1086, %v1086
      %v1151 = vpack.c.bf16 %v1087, %v1087
      %v1152 = vpack.c.bf16 %v1088, %v1088
      %v1153 = vpack.c.bf16 %v1089, %v1089
      %v1154 = vpack.c.bf16 %v1090, %v1090
      %v1155 = vpack.c.bf16 %v1091, %v1091
      %v1156 = vpack.c.bf16 %v1092, %v1092
      %v1157 = vpack.c.bf16 %v1093, %v1093
      %v1158 = vpack.c.bf16 %v1094, %v1094
      %v1159 = vpack.c.bf16 %v1095, %v1095
      %v1160 = vpack.c.bf16 %v1096, %v1096
      %v1161 = vpack.c.bf16 %v1097, %v1097
      %v1162 = vpack.c.bf16 %v1098, %v1098
      %v1163 = vpack.c.bf16 %v1099, %v1099
      %v1164 = vpack.c.bf16 %v1100, %v1100
      %v1165 = vpack.c.bf16 %v1101, %v1101
      %v1166 = vpack.c.bf16 %v1102, %v1102
      %v1167 = vpack.c.bf16 %v1103, %v1103
      %v1168 = vpack.c.bf16 %v1104, %v1104
      %v1169 = vpack.c.bf16 %v1105, %v1105
      %v1170 = vpack.c.bf16 %v1106, %v1106
      %v1171 = vpack.c.bf16 %v1107, %v1107
      %v1172 = vpack.c.bf16 %v1108, %v1108
      %v1173 = vpack.c.bf16 %v1109, %v1109
      %v1174 = vpack.c.bf16 %v1110, %v1110
      %v1175 = vpack.c.bf16 %v1111, %v1111
      %v1176 = vpack.c.bf16 %v1112, %v1112
      %v1177 = vpack.c.bf16 %v1113, %v1113
      %v1178 = vpack.c.bf16 %v1114, %v1114
      %v1179 = vpack.c.bf16 %v1115, %v1115
      %v1180 = vpack.c.bf16 %v1116, %v1116
      %v1181 = vpack.c.bf16 %v1117, %v1117
      %v1182 = vpack.c.bf16 %v1118, %v1118
      %v1183 = vpack.c.bf16 %v1119, %v1119
      %v1184 = vpack.c.bf16 %v1120, %v1120
      %v1185 = vpack.c.bf16 %v1121, %v1121
      %v1186 = vpack.c.bf16 %v1122, %v1122
      %v1187 = vpack.c.bf16 %v1123, %v1123
      %v1188 = vpack.c.bf16 %v1124, %v1124
      %v1189 = vpack.c.bf16 %v1125, %v1125
      %v1190 = vpack.c.bf16 %v1126, %v1126
      %v1191 = vpack.c.bf16 %v1127, %v1127
      %v1192 = vpack.c.bf16 %v1128, %v1128
      %v1193 = vpack.c.bf16 %v1129, %v1129
      %v1194 = vpack.c.bf16 %v1130, %v1130
      %v1195 = vpack.c.bf16 %v1131, %v1131
      %v1196 = vpack.c.bf16 %v1132, %v1132
      %v1197 = vpack.c.bf16 %v1133, %v1133
      %v1198 = vpack.c.bf16 %v1134, %v1134
      %v1199 = vpack.c.bf16 %v1135, %v1135
      %v1200 = vpack.c.bf16 %v1136, %v1136
      %v1201 = vpack.c.bf16 %v1137, %v1137
      %v1202 = vpack.c.bf16 %v1138, %v1138
      %v1203 = vpack.c.bf16 %v1139, %v1139
      %v1204 = vpack.c.bf16 %v1140, %v1140
      %v1205 = vpack.c.bf16 %v1141, %v1141
      %v1206 = vpack.c.bf16 %v1142, %v1142
      %v1207 = vpack.c.bf16 %v1143, %v1143
      %v1208 = vpack.c.bf16 %v1144, %v1144
      %v1209 = vpack.c.bf16 %v1145, %v1145
      %1210 = vst [vmem:[%s226] sm:$0xf] %v1146
      %1211 = vst [vmem:[%s226 + $0x4] sm:$0xf] %v1147
      %1212 = vst [vmem:[%s226 + $0x8] sm:$0xf] %v1148
      %1213 = vst [vmem:[%s226 + $0xc] sm:$0xf] %v1149
      %1214 = vst [vmem:[%s226 + $0x10] sm:$0xf] %v1150
      %1215 = vst [vmem:[%s226 + $0x14] sm:$0xf] %v1151
      %1216 = vst [vmem:[%s226 + $0x18] sm:$0xf] %v1152
      %1217 = vst [vmem:[%s226 + $0x1c] sm:$0xf] %v1153
      %1218 = vst [vmem:[%s226 + $0x20] sm:$0xf] %v1154
      %1219 = vst [vmem:[%s226 + $0x24] sm:$0xf] %v1155
      %1220 = vst [vmem:[%s226 + $0x28] sm:$0xf] %v1156
      %1221 = vst [vmem:[%s226 + $0x2c] sm:$0xf] %v1157
      %1222 = vst [vmem:[%s226 + $0x30] sm:$0xf] %v1158
      %1223 = vst [vmem:[%s226 + $0x34] sm:$0xf] %v1159
      %1224 = vst [vmem:[%s226 + $0x38] sm:$0xf] %v1160
      %1225 = vst [vmem:[%s226 + $0x3c] sm:$0xf] %v1161
      %1226 = vst [vmem:[%s226 + $0x40] sm:$0xf] %v1162
      %1227 = vst [vmem:[%s226 + $0x44] sm:$0xf] %v1163
      %1228 = vst [vmem:[%s226 + $0x48] sm:$0xf] %v1164
      %1229 = vst [vmem:[%s226 + $0x4c] sm:$0xf] %v1165
      %1230 = vst [vmem:[%s226 + $0x50] sm:$0xf] %v1166
      %1231 = vst [vmem:[%s226 + $0x54] sm:$0xf] %v1167
      %1232 = vst [vmem:[%s226 + $0x58] sm:$0xf] %v1168
      %1233 = vst [vmem:[%s226 + $0x5c] sm:$0xf] %v1169
      %1234 = vst [vmem:[%s226 + $0x60] sm:$0xf] %v1170
      %1235 = vst [vmem:[%s226 + $0x64] sm:$0xf] %v1171
      %1236 = vst [vmem:[%s226 + $0x68] sm:$0xf] %v1172
      %1237 = vst [vmem:[%s226 + $0x6c] sm:$0xf] %v1173
      %1238 = vst [vmem:[%s226 + $0x70] sm:$0xf] %v1174
      %1239 = vst [vmem:[%s226 + $0x74] sm:$0xf] %v1175
      %1240 = vst [vmem:[%s226 + $0x78] sm:$0xf] %v1176
      %1241 = vst [vmem:[%s226 + $0x7c] sm:$0xf] %v1177
      %1242 = vst [vmem:[%s226 + $0x80] sm:$0xf] %v1178
      %1243 = vst [vmem:[%s226 + $0x84] sm:$0xf] %v1179
      %1244 = vst [vmem:[%s226 + $0x88] sm:$0xf] %v1180
      %1245 = vst [vmem:[%s226 + $0x8c] sm:$0xf] %v1181
      %1246 = vst [vmem:[%s226 + $0x90] sm:$0xf] %v1182
      %1247 = vst [vmem:[%s226 + $0x94] sm:$0xf] %v1183
      %1248 = vst [vmem:[%s226 + $0x98] sm:$0xf] %v1184
      %1249 = vst [vmem:[%s226 + $0x9c] sm:$0xf] %v1185
      %1250 = vst [vmem:[%s226 + $0xa0] sm:$0xf] %v1186
      %1251 = vst [vmem:[%s226 + $0xa4] sm:$0xf] %v1187
      %1252 = vst [vmem:[%s226 + $0xa8] sm:$0xf] %v1188
      %1253 = vst [vmem:[%s226 + $0xac] sm:$0xf] %v1189
      %1254 = vst [vmem:[%s226 + $0xb0] sm:$0xf] %v1190
      %1255 = vst [vmem:[%s226 + $0xb4] sm:$0xf] %v1191
      %1256 = vst [vmem:[%s226 + $0xb8] sm:$0xf] %v1192
      %1257 = vst [vmem:[%s226 + $0xbc] sm:$0xf] %v1193
      %1258 = vst [vmem:[%s226 + $0xc0] sm:$0xf] %v1194
      %1259 = vst [vmem:[%s226 + $0xc4] sm:$0xf] %v1195
      %1260 = vst [vmem:[%s226 + $0xc8] sm:$0xf] %v1196
      %1261 = vst [vmem:[%s226 + $0xcc] sm:$0xf] %v1197
      %1262 = vst [vmem:[%s226 + $0xd0] sm:$0xf] %v1198
      %1263 = vst [vmem:[%s226 + $0xd4] sm:$0xf] %v1199
      %1264 = vst [vmem:[%s226 + $0xd8] sm:$0xf] %v1200
      %1265 = vst [vmem:[%s226 + $0xdc] sm:$0xf] %v1201
      %1266 = vst [vmem:[%s226 + $0xe0] sm:$0xf] %v1202
      %1267 = vst [vmem:[%s226 + $0xe4] sm:$0xf] %v1203
      %1268 = vst [vmem:[%s226 + $0xe8] sm:$0xf] %v1204
      %1269 = vst [vmem:[%s226 + $0xec] sm:$0xf] %v1205
      %1270 = vst [vmem:[%s226 + $0xf0] sm:$0xf] %v1206
      %1271 = vst [vmem:[%s226 + $0xf4] sm:$0xf] %v1207
      %1272 = vst [vmem:[%s226 + $0xf8] sm:$0xf] %v1208
      %1273 = vst [vmem:[%s226 + $0xfc] sm:$0xf] %v1209
      %s1274 = smul.u32 64, %s19
      %p1275 = scmp.lt.s32.totalorder %s1274, 255
      %s1276 = scalar_select %p1275, %s1274, 255
      %p1277 = scmp.lt.s32.totalorder %s18, 0
      %s1278 = scalar_select %p1277, %s18, 0
      %s1279 = sadd.s32 %s1278, %s1276
      %s1280 = smul.addr %s1279, 4
      %s1281 = scalar_lea.vmem %s3, %s1280
      // Predicated region
      $region33: #{_stem.1} parent=31 // pred_check
        %p1282 = pneg %p124
      $region34: #{_stem.1} parent=31 // pred_check_branch
        %1284 = sbr.rel (%p1282) target = $region36
      $region35: #{_stem.1} parent=31 // pred_region
        %s1285 = smul.u32 64, %s19
      $region36: #{_stem.1} parent=31 // pred_fallthru
        _
    $region32: #{_stem.1} parent=5 // pred_fallthru
      _
    %p1286 = scmp.le.s32.totalorder 2, %s9
    // Predicated region
    $region37: #{_stem.1} parent=5 // pred_check
      %p1287 = pneg %p1286
    $region38: #{_stem.1} parent=5 // pred_check_branch
      %1289 = sbr.rel (%p1287) target = $region40
    $region39: #{_stem.1} parent=5 // pred_region
      %s1290 = ssub.s32 %s9, 2
      // Predicated region
      $region41: #{_stem.1} parent=39 // pred_check
        %p1291 = pneg %p130
      $region42: #{_stem.1} parent=39 // pred_check_branch
        %1293 = sbr.rel (%p1291) target = $region44
      $region43: #{_stem.1} parent=39 // pred_region
        %s1294 = smul.u32 64, %s21
        %p1295 = scmp.lt.s32.totalorder %s1294, 255
        %s1296 = scalar_select %p1295, %s1294, 255
        %p1297 = scmp.lt.s32.totalorder %s20, 0
        %s1298 = scalar_select %p1297, %s20, 0
        %s1299 = sadd.s32 %s1298, %s1296
        %s1300 = smul.addr %s1299, 4
        %s1301 = scalar_lea.vmem %s3, %s1300
      $region44: #{_stem.1} parent=39 // pred_fallthru
        _
    $region40: #{_stem.1} parent=5 // pred_fallthru
      _
  $region6: #{_stem.1} parent=0 // loop_footer
    %s13 = sadd.s32 1, %s9
  $region7: #{_stem.1} parent=0 // loop_footer_branch
    %8 = sbr.rel target = $region3
  $region8: #{_stem.1} parent=0 // loop_exit
    _

</llo_original>
